<compile_context>
chip_gen: v6e
topology: v6e:2x2x1
jax: 0.10.0
libtpu: 0.0.40
codegen_flags: <defaults>
</compile_context>

<pallas_src>
import functools
import math

import jax
import jax.numpy as jnp
from jax.experimental import pallas as pl
from jax.experimental.pallas import tpu as pltpu


# ----------------------------------------------------------------------------
# Kernel 1: full-width fused kernel (both WxW weights resident in VMEM).
# ----------------------------------------------------------------------------
def _fused_kernel(a1_ref, a2_ref,                  # SMEM scalars, shape (1,)
                  x_ref, w1t_ref, w2t_ref,          # VMEM: (tm,W), (W,W), (W,W)
                  g1_ref, b1_ref, g2_ref, b2_ref,   # VMEM: (1,W) f32 each
                  o_ref):
    # fc1 (no bias): x @ W1.T — weights pre-transposed to (in,out) in the
    # wrapper, so this is the canonical (M,K)x(K,N) MXU contraction; f32 acc.
    h = jnp.dot(x_ref[...], w1t_ref[...], preferred_element_type=jnp.float32)
    # DyT1 + ReLU (VPU/EUP, f32)
    h = jnp.tanh(a1_ref[0] * h) * g1_ref[...] + b1_ref[...]
    h = jnp.maximum(h, 0.0)
    # fc2 (no bias): h @ W2.T
    h = jnp.dot(h.astype(w2t_ref.dtype), w2t_ref[...],
                preferred_element_type=jnp.float32)
    # DyT2 + residual + ReLU; residual is re-read here (not kept live as an
    # f32 copy across both matmuls).
    h = jnp.tanh(a2_ref[0] * h) * g2_ref[...] + b2_ref[...]
    h = jnp.maximum(h + x_ref[...].astype(jnp.float32), 0.0)
    o_ref[...] = h.astype(o_ref.dtype)


# ----------------------------------------------------------------------------
# Kernel 2: hidden-dim (K)-blocked variant for large W.
#   per k-step: h_k = x @ W1.T[:, k-block]; DyT1+ReLU on the block;
#               acc += h_k @ W2.T[k-block, :]
#   finalize (DyT2 + residual + ReLU) at the last k under pl.when.
# ----------------------------------------------------------------------------
def _kblock_kernel(a1_ref, a2_ref,
                   x_ref, w1t_ref, w2t_ref,          # (tm,W), (W,tk), (tk,W)
                   g1_ref, b1_ref, g2_ref, b2_ref,   # (1,tk),(1,tk),(1,W),(1,W)
                   o_ref, acc_ref):
    k = pl.program_id(1)

    @pl.when(k == 0)
    def _():
        acc_ref[...] = jnp.zeros_like(acc_ref)

    h = jnp.dot(x_ref[...], w1t_ref[...], preferred_element_type=jnp.float32)
    h = jnp.tanh(a1_ref[0] * h) * g1_ref[...] + b1_ref[...]
    h = jnp.maximum(h, 0.0)
    acc_ref[...] += jnp.dot(h.astype(w2t_ref.dtype), w2t_ref[...],
                            preferred_element_type=jnp.float32)

    @pl.when(k == pl.num_programs(1) - 1)
    def _():
        out = jnp.tanh(a2_ref[0] * acc_ref[...]) * g2_ref[...] + b2_ref[...]
        out = jnp.maximum(out + x_ref[...].astype(jnp.float32), 0.0)
        o_ref[...] = out.astype(o_ref.dtype)


# ----------------------------------------------------------------------------
# Build helpers (cached: no re-trace / rebuild per invocation)
# ----------------------------------------------------------------------------
_SMEM_SPEC = pl.BlockSpec(memory_space=pltpu.MemorySpace.SMEM)


@functools.lru_cache(maxsize=None)
def _vmem_limit_bytes():
    cap = 64 * 1024 * 1024                      # conservative (v7x per-TC) default
    try:                                        # benign hardware query fallback
        cap = int(getattr(pltpu.get_tpu_info(), "vmem_capacity_bytes", cap)) or cap
    except Exception:
        pass
    # ~80% of physical VMEM, capped; leaves headroom for compiler scratch.
    return min(int(cap * 0.8), 112 * 1024 * 1024)


@functools.lru_cache(maxsize=None)
def _build_fused_call(B, W, tm, x_dtype, w_dtype, out_dtype, vmem_limit):
    x_dt, w_dt, out_dt = (jnp.dtype(d) for d in (x_dtype, w_dtype, out_dtype))
    n_tiles = pl.cdiv(B, tm)
    tile = pl.BlockSpec((tm, W), lambda i: (i, 0))
    wmat = pl.BlockSpec((W, W), lambda i: (0, 0))
    vec = pl.BlockSpec((1, W), lambda i: (0, 0))
    cost = pl.CostEstimate(
        flops=4 * B * W * W,
        transcendentals=2 * B * W,
        bytes_accessed=B * W * (x_dt.itemsize + out_dt.itemsize)
                       + 2 * W * W * w_dt.itemsize + 4 * W * 4)
    return pl.pallas_call(
        _fused_kernel,
        out_shape=jax.ShapeDtypeStruct((B, W), out_dt),
        grid=(n_tiles,),
        in_specs=[_SMEM_SPEC, _SMEM_SPEC, tile, wmat, wmat, vec, vec, vec, vec],
        out_specs=tile,
        compiler_params=pltpu.CompilerParams(
            dimension_semantics=("parallel",),
            vmem_limit_bytes=vmem_limit),
        cost_estimate=cost,
    )


@functools.lru_cache(maxsize=None)
def _build_kblock_call(B, W, tm, tk, x_dtype, w_dtype, out_dtype, vmem_limit):
    x_dt, w_dt, out_dt = (jnp.dtype(d) for d in (x_dtype, w_dtype, out_dtype))
    n_tiles = pl.cdiv(B, tm)
    n_k = W // tk
    cost = pl.CostEstimate(
        flops=4 * B * W * W,
        transcendentals=2 * B * W,
        bytes_accessed=B * W * (x_dt.itemsize + out_dt.itemsize)
                       + n_tiles * 2 * W * W * w_dt.itemsize + 4 * W * 4)
    return pl.pallas_call(
        _kblock_kernel,
        out_shape=jax.ShapeDtypeStruct((B, W), out_dt),
        grid=(n_tiles, n_k),
        in_specs=[
            _SMEM_SPEC, _SMEM_SPEC,
            pl.BlockSpec((tm, W), lambda i, k: (i, 0)),   # x (resident over k)
            pl.BlockSpec((W, tk), lambda i, k: (0, k)),   # W1.T hidden block
            pl.BlockSpec((tk, W), lambda i, k: (k, 0)),   # W2.T hidden block
            pl.BlockSpec((1, tk), lambda i, k: (0, k)),   # gamma1 block
            pl.BlockSpec((1, tk), lambda i, k: (0, k)),   # beta1 block
            pl.BlockSpec((1, W), lambda i, k: (0, 0)),    # gamma2
            pl.BlockSpec((1, W), lambda i, k: (0, 0)),    # beta2
        ],
        out_specs=pl.BlockSpec((tm, W), lambda i, k: (i, 0)),
        scratch_shapes=[pltpu.VMEM((tm, W), jnp.float32)],
        compiler_params=pltpu.CompilerParams(
            dimension_semantics=("parallel", "arbitrary"),
            vmem_limit_bytes=vmem_limit),
        cost_estimate=cost,
    )


# ----------------------------------------------------------------------------
# Tiling heuristics / VMEM footprint guards
# ----------------------------------------------------------------------------
def _choose_tile_m(B):
    """Batch-tile rows: large enough to feed the MXU and amortize the ~0.35us
    per-grid-step overhead, preferring an exact split into an EVEN number of
    tiles so v7x's two TensorCores stay balanced with no partial tail."""
    if B < 256:
        return B                                  # single full-dim tile (toy B)
    if B < 512:
        base, cap = 128, 256
    elif B < 2048:
        base, cap = 256, 512
    else:
        base, cap = 512, 1024
    cands = list(range(cap, 63, -64))             # multiples of 64, largest first
    for even_only in (True, False):
        for t in cands:
            n = B // t
            if B % t == 0 and n >= 2 and (n % 2 == 0 or not even_only):
                return t
    return base                                   # ragged: masked partial tail


def _fused_footprint(tm, W, x_bytes, w_bytes, out_bytes):
    weights = 2 * 2 * W * W * w_bytes             # W1.T, W2.T (double-buffered)
    tiles = 2 * tm * W * (x_bytes + out_bytes)    # x / out tiles (double-buffered)
    interm = 2 * tm * W * 4                       # f32 intermediates
    vecs = 4 * 2 * W * 4
    return weights + tiles + interm + vecs


def _choose_tk(W, tm, x_bytes, w_bytes, out_bytes, vmem_limit):
    for tk in (512, 256, 128):
        if W % tk:
            continue
        weights = 2 * 2 * tk * W * w_bytes
        tiles = 2 * tm * W * (x_bytes + out_bytes)
        acc = tm * W * 4
        if weights + tiles + acc + 2 * tm * tk * 4 <= vmem_limit:
            return tk
    return None


# ----------------------------------------------------------------------------
# Public wrapper
# ----------------------------------------------------------------------------
def temp_residual_layer(x, w1, w2, alpha1, gamma1, beta1, alpha2, gamma2, beta2,
                        *, matmul_dtype=None, hidden_block=None):
    """tempResidualLayer forward (dropout=None).

    x: (B, W).  w1, w2: (W, W) in PyTorch Linear layout (out_features, in_features).
    matmul_dtype: optional dtype for the MXU path (e.g. jnp.bfloat16 on v5e);
      accumulation, DyT and the residual stay f32; output keeps x.dtype.
    hidden_block: optional hidden-dim block size (multiple of 128 dividing W)
      forcing the K-blocked accumulator variant; None = auto (VMEM guard).
    """
    B, W = x.shape
    out_dtype = jnp.dtype(x.dtype)

    # One-time weight transpose to (in, out): call-invariant, const-folded by
    # XLA under jit, and guarantees the canonical MXU contraction in-kernel.
    w1t = jnp.swapaxes(jnp.asarray(w1), 0, 1)
    w2t = jnp.swapaxes(jnp.asarray(w2), 0, 1)
    if matmul_dtype is not None:
        x = x.astype(matmul_dtype)
        w1t = w1t.astype(matmul_dtype)
        w2t = w2t.astype(matmul_dtype)

    a1 = jnp.asarray(alpha1, jnp.float32).reshape(1)
    a2 = jnp.asarray(alpha2, jnp.float32).reshape(1)
    g1 = jnp.asarray(gamma1, jnp.float32).reshape(1, W)
    b1 = jnp.asarray(beta1, jnp.float32).reshape(1, W)
    g2 = jnp.asarray(gamma2, jnp.float32).reshape(1, W)
    b2 = jnp.asarray(beta2, jnp.float32).reshape(1, W)

    tm = _choose_tile_m(B)
    vmem_limit = _vmem_limit_bytes()
    x_bytes = jnp.dtype(x.dtype).itemsize
    w_bytes = jnp.dtype(w1t.dtype).itemsize
    out_bytes = out_dtype.itemsize

    tk = None
    if hidden_block is not None:
        if W % hidden_block or hidden_block % 128:
            raise ValueError("hidden_block must be a multiple of 128 dividing W")
        tk = int(hidden_block)
    elif _fused_footprint(tm, W, x_bytes, w_bytes, out_bytes) > vmem_limit:
        tk = _choose_tk(W, tm, x_bytes, w_bytes, out_bytes, vmem_limit)
        # TODO(synk): if no 128-multiple tk divides W at these sizes, fall back
        # to plain XLA (or a padded-W variant) instead of the fused kernel.

    if tk is not None:
        call = _build_kblock_call(B, W, tm, tk, str(x.dtype), str(w1t.dtype),
                                  str(out_dtype), vmem_limit)
    else:
        call = _build_fused_call(B, W, tm, str(x.dtype), str(w1t.dtype),
                                 str(out_dtype), vmem_limit)
    return call(a1, a2, x, w1t, w2t, g1, b1, g2, b2)


# ----------------------------------------------------------------------------
# Reference / init helpers and self-test
# ----------------------------------------------------------------------------
def init_linear_weight(key, width):
    """Mirror weight_initializer: trunc_normal(mean=0, std, a=-2std, b=2std)."""
    fan_avg = 0.5 * (width + width)
    std = math.sqrt(1.0 / fan_avg / 10.0)
    return jax.random.truncated_normal(key, -2.0, 2.0, (width, width),
                                       jnp.float32) * std


def reference_forward(x, w1, w2, a1, g1, b1, a2, g2, b2):
    out = x @ w1.T
    out = jnp.tanh(a1 * out) * g1 + b1
    out = jnp.maximum(out, 0.0)
    out = out @ w2.T
    out = jnp.tanh(a2 * out) * g2 + b2
    out = out + x
    return jnp.maximum(out, 0.0)


if __name__ == "__main__":
    key = jax.random.PRNGKey(0)

    def make_case(B, W, kk):
        kx, k1, k2 = jax.random.split(kk, 3)
        x = jax.random.normal(kx, (B, W), jnp.float32)
        w1 = init_linear_weight(k1, W)
        w2 = init_linear_weight(k2, W)
        params = (jnp.array([0.5], jnp.float32), jnp.ones((W,), jnp.float32),
                  jnp.zeros((W,), jnp.float32), jnp.array([0.5], jnp.float32),
                  jnp.ones((W,), jnp.float32), jnp.zeros((W,), jnp.float32))
        return x, w1, w2, params

    k0, k1, k2 = jax.random.split(key, 3)

    # 1) f32, even exact batch split (2 tiles of 128) — fused kernel
    x, w1, w2, p = make_case(256, 128, k0)
    out = jax.block_until_ready(temp_residual_layer(x, w1, w2, *p))
    ref = reference_forward(x, w1, w2, *p)
    assert out.dtype == x.dtype
    assert jnp.allclose(out, ref, atol=1e-3, rtol=1e-3), "f32 fused mismatch"

    # 2) bf16 inputs (native MXU rate on v6e/v7x), f32 accumulation in-kernel
    xb, w1b, w2b = (t.astype(jnp.bfloat16) for t in (x, w1, w2))
    outb = jax.block_until_ready(temp_residual_layer(xb, w1b, w2b, *p))
    refb = reference_forward(xb.astype(jnp.float32), w1b.astype(jnp.float32),
                             w2b.astype(jnp.float32), *p)
    assert outb.dtype == jnp.bfloat16
    assert jnp.allclose(outb.astype(jnp.float32), refb,
                        atol=5e-2, rtol=5e-2), "bf16 fused mismatch"

    # 3) ragged batch: no pad/slice passes, Pallas masks the partial tail block
    x3, w13, w23, p3 = make_case(300, 128, k1)
    out3 = jax.block_until_ready(temp_residual_layer(x3, w13, w23, *p3))
    ref3 = reference_forward(x3, w13, w23, *p3)
    assert out3.shape == (300, 128)
    assert jnp.allclose(out3, ref3, atol=1e-3, rtol=1e-3), "ragged mismatch"

    # 4) forced hidden-dim (K-blocked) accumulator variant (n_k = 2)
    x4, w14, w24, p4 = make_case(256, 256, k2)
    out4 = jax.block_until_ready(
        temp_residual_layer(x4, w14, w24, *p4, hidden_block=128))
    ref4 = reference_forward(x4, w14, w24, *p4)
    assert jnp.allclose(out4, ref4, atol=1e-3, rtol=1e-3), "k-blocked mismatch"

    # 5) optional reduced-precision MXU path (recommended on v5e): f32 in/out
    out5 = jax.block_until_ready(
        temp_residual_layer(x, w1, w2, *p, matmul_dtype=jnp.bfloat16))
    assert out5.dtype == jnp.float32
    assert jnp.allclose(out5, ref, atol=5e-2, rtol=5e-2), "bf16-MXU mismatch"

    print("KERNEL_OK")
</pallas_src>

<mosaic_0001>
module attributes {stable_mosaic.version = 11 : i64} {
  func.func @_fused_kernel(%arg0: i32, %arg1: memref<1xf32, #tpu.memory_space<smem>>, %arg2: memref<1xf32, #tpu.memory_space<smem>>, %arg3: memref<128x128xf32, #tpu.memory_space<vmem>>, %arg4: memref<128x128xf32, #tpu.memory_space<vmem>>, %arg5: memref<128x128xf32, #tpu.memory_space<vmem>>, %arg6: memref<1x128xf32, #tpu.memory_space<vmem>>, %arg7: memref<1x128xf32, #tpu.memory_space<vmem>>, %arg8: memref<1x128xf32, #tpu.memory_space<vmem>>, %arg9: memref<1x128xf32, #tpu.memory_space<vmem>>, %arg10: memref<128x128xf32, #tpu.memory_space<vmem>>) attributes {dimension_semantics = [#tpu.dimension_semantics<parallel>], iteration_bounds = array<i64: 2>, scalar_prefetch = 0 : i64, scratch_operands = 0 : i64, tpu.core_type = #tpu.core_type<tc>, window_params = [{transform_indices = @transform_0, window_bounds = array<i64: 1>}, {transform_indices = @transform_1, window_bounds = array<i64: 1>}, {transform_indices = @transform_2, window_bounds = array<i64: 128, 128>}, {pipeline_mode = #tpu.pipeline_mode<synchronous>, transform_indices = @transform_3, window_bounds = array<i64: 128, 128>}, {pipeline_mode = #tpu.pipeline_mode<synchronous>, transform_indices = @transform_4, window_bounds = array<i64: 128, 128>}, {pipeline_mode = #tpu.pipeline_mode<synchronous>, transform_indices = @transform_5, window_bounds = array<i64: 1, 128>}, {pipeline_mode = #tpu.pipeline_mode<synchronous>, transform_indices = @transform_6, window_bounds = array<i64: 1, 128>}, {pipeline_mode = #tpu.pipeline_mode<synchronous>, transform_indices = @transform_7, window_bounds = array<i64: 1, 128>}, {pipeline_mode = #tpu.pipeline_mode<synchronous>, transform_indices = @transform_8, window_bounds = array<i64: 1, 128>}, {transform_indices = @transform_9, window_bounds = array<i64: 128, 128>}]} {
    %c0 = arith.constant 0 : index
    %c0_0 = arith.constant 0 : index
    %0 = vector.load %arg3[%c0, %c0_0] : memref<128x128xf32, #tpu.memory_space<vmem>>, vector<128x128xf32>
    %c0_1 = arith.constant 0 : index
    %c0_2 = arith.constant 0 : index
    %1 = vector.load %arg4[%c0_1, %c0_2] : memref<128x128xf32, #tpu.memory_space<vmem>>, vector<128x128xf32>
    %cst = arith.constant dense<0.000000e+00> : vector<128x128xf32>
    %2 = tpu.matmul %0, %1, %cst {dimension_numbers = #tpu.dot_dimension_numbers<[1], [0], [0], [1], [0, 0, 1, 1], [], []>} : vector<128x128xf32>, vector<128x128xf32>, vector<128x128xf32> -> vector<128x128xf32>
    %c0_3 = arith.constant 0 : index
    %3 = memref.load %arg1[%c0_3] : memref<1xf32, #tpu.memory_space<smem>>
    %4 = vector.broadcast %3 : f32 to vector<128x128xf32>
    %5 = arith.mulf %4, %2 : vector<128x128xf32>
    %6 = math.tanh %5 : vector<128x128xf32>
    %c0_4 = arith.constant 0 : index
    %c0_5 = arith.constant 0 : index
    %7 = vector.load %arg6[%c0_4, %c0_5] : memref<1x128xf32, #tpu.memory_space<vmem>>, vector<1x128xf32>
    %8 = vector.broadcast %7 : vector<1x128xf32> to vector<128x128xf32>
    %9 = arith.mulf %6, %8 : vector<128x128xf32>
    %c0_6 = arith.constant 0 : index
    %c0_7 = arith.constant 0 : index
    %10 = vector.load %arg7[%c0_6, %c0_7] : memref<1x128xf32, #tpu.memory_space<vmem>>, vector<1x128xf32>
    %11 = vector.broadcast %10 : vector<1x128xf32> to vector<128x128xf32>
    %12 = arith.addf %9, %11 : vector<128x128xf32>
    %cst_8 = arith.constant 0.000000e+00 : f32
    %13 = vector.broadcast %cst_8 : f32 to vector<128x128xf32>
    %14 = arith.maximumf %12, %13 : vector<128x128xf32>
    %c0_9 = arith.constant 0 : index
    %c0_10 = arith.constant 0 : index
    %15 = vector.load %arg5[%c0_9, %c0_10] : memref<128x128xf32, #tpu.memory_space<vmem>>, vector<128x128xf32>
    %cst_11 = arith.constant dense<0.000000e+00> : vector<128x128xf32>
    %16 = tpu.matmul %14, %15, %cst_11 {dimension_numbers = #tpu.dot_dimension_numbers<[1], [0], [0], [1], [0, 0, 1, 1], [], []>} : vector<128x128xf32>, vector<128x128xf32>, vector<128x128xf32> -> vector<128x128xf32>
    %c0_12 = arith.constant 0 : index
    %17 = memref.load %arg2[%c0_12] : memref<1xf32, #tpu.memory_space<smem>>
    %18 = vector.broadcast %17 : f32 to vector<128x128xf32>
    %19 = arith.mulf %18, %16 : vector<128x128xf32>
    %20 = math.tanh %19 : vector<128x128xf32>
    %c0_13 = arith.constant 0 : index
    %c0_14 = arith.constant 0 : index
    %21 = vector.load %arg8[%c0_13, %c0_14] : memref<1x128xf32, #tpu.memory_space<vmem>>, vector<1x128xf32>
    %22 = vector.broadcast %21 : vector<1x128xf32> to vector<128x128xf32>
    %23 = arith.mulf %20, %22 : vector<128x128xf32>
    %c0_15 = arith.constant 0 : index
    %c0_16 = arith.constant 0 : index
    %24 = vector.load %arg9[%c0_15, %c0_16] : memref<1x128xf32, #tpu.memory_space<vmem>>, vector<1x128xf32>
    %25 = vector.broadcast %24 : vector<1x128xf32> to vector<128x128xf32>
    %26 = arith.addf %23, %25 : vector<128x128xf32>
    %c0_17 = arith.constant 0 : index
    %c0_18 = arith.constant 0 : index
    %27 = vector.load %arg3[%c0_17, %c0_18] : memref<128x128xf32, #tpu.memory_space<vmem>>, vector<128x128xf32>
    %28 = arith.addf %26, %27 : vector<128x128xf32>
    %cst_19 = arith.constant 0.000000e+00 : f32
    %29 = vector.broadcast %cst_19 : f32 to vector<128x128xf32>
    %30 = arith.maximumf %28, %29 : vector<128x128xf32>
    %c0_20 = arith.constant 0 : index
    %c0_21 = arith.constant 0 : index
    %31 = vector.load %arg10[%c0_20, %c0_21] : memref<128x128xf32, #tpu.memory_space<vmem>>, vector<128x128xf32>
    tpu.vector_store %arg10[%c0_20, %c0_21], %30 {strides = array<i32>} : memref<128x128xf32, #tpu.memory_space<vmem>>, vector<128x128xf32>,
    return
  }
  func.func @transform_0(%arg0: i32) -> i32 {
    %c0_i32 = arith.constant 0 : i32
    %c0_i32_0 = arith.constant 0 : i32
    return %c0_i32 : i32
  }
  func.func @transform_1(%arg0: i32) -> i32 {
    %c0_i32 = arith.constant 0 : i32
    %c0_i32_0 = arith.constant 0 : i32
    return %c0_i32 : i32
  }
  func.func @transform_2(%arg0: i32) -> (i32, i32) {
    %c0_i32 = arith.constant 0 : i32
    %c0_i32_0 = arith.constant 0 : i32
    return %arg0, %c0_i32 : i32, i32
  }
  func.func @transform_3(%arg0: i32) -> (i32, i32) {
    %c0_i32 = arith.constant 0 : i32
    %c0_i32_0 = arith.constant 0 : i32
    %c0_i32_1 = arith.constant 0 : i32
    return %c0_i32, %c0_i32_0 : i32, i32
  }
  func.func @transform_4(%arg0: i32) -> (i32, i32) {
    %c0_i32 = arith.constant 0 : i32
    %c0_i32_0 = arith.constant 0 : i32
    %c0_i32_1 = arith.constant 0 : i32
    return %c0_i32, %c0_i32_0 : i32, i32
  }
  func.func @transform_5(%arg0: i32) -> (i32, i32) {
    %c0_i32 = arith.constant 0 : i32
    %c0_i32_0 = arith.constant 0 : i32
    %c0_i32_1 = arith.constant 0 : i32
    return %c0_i32, %c0_i32_0 : i32, i32
  }
  func.func @transform_6(%arg0: i32) -> (i32, i32) {
    %c0_i32 = arith.constant 0 : i32
    %c0_i32_0 = arith.constant 0 : i32
    %c0_i32_1 = arith.constant 0 : i32
    return %c0_i32, %c0_i32_0 : i32, i32
  }
  func.func @transform_7(%arg0: i32) -> (i32, i32) {
    %c0_i32 = arith.constant 0 : i32
    %c0_i32_0 = arith.constant 0 : i32
    %c0_i32_1 = arith.constant 0 : i32
    return %c0_i32, %c0_i32_0 : i32, i32
  }
  func.func @transform_8(%arg0: i32) -> (i32, i32) {
    %c0_i32 = arith.constant 0 : i32
    %c0_i32_0 = arith.constant 0 : i32
    %c0_i32_1 = arith.constant 0 : i32
    return %c0_i32, %c0_i32_0 : i32, i32
  }
  func.func @transform_9(%arg0: i32) -> (i32, i32) {
    %c0_i32 = arith.constant 0 : i32
    %c0_i32_0 = arith.constant 0 : i32
    return %arg0, %c0_i32 : i32, i32
  }
}

</mosaic_0001>

<llo_original>
// kernel: tpu_custom_call.1
$region0: #{tpu_custom_call.1}
  #allocation0 [shape = 'u32[]', space=smem, size = 0x4, offset = 0x4, fixed_abs, tag = 'smem constant byte address 0x4 - core index']
  #allocation1 [shape = 'u32[144,128]{1,0:T(1,128)}', space=vmem, size = 0x12000, scoped, tag = 'internal scratch']
  #allocation2 [shape = 'f32[1]{0:T(128)S(6)}', space=smem, size = 0x200, scoped, tag = 'scoped memory for tpu_custom_call.1']
  #allocation3 [shape = 'f32[1]{0:T(128)S(6)}', space=smem, size = 0x200, scoped, tag = 'scoped memory for tpu_custom_call.1']
  %s0 = inlined_call_operand.<no memory space> [shape: f32[1], index: 0, kind: input, shape index: {}]
  %s1 = inlined_call_operand.<no memory space> [shape: f32[1], index: 1, kind: input, shape index: {}]
  %s2 = inlined_call_operand.hbm [shape: f32[256,128], index: 2, kind: input, shape index: {}]
  %s3 = inlined_call_operand.hbm [shape: f32[128,128], index: 3, kind: input, shape index: {}]
  %s4 = inlined_call_operand.hbm [shape: f32[128,128], index: 4, kind: input, shape index: {}]
  %s5 = inlined_call_operand.vmem [shape: f32[1,128], index: 5, kind: input, shape index: {}]
  %s6 = inlined_call_operand.vmem [shape: f32[1,128], index: 6, kind: input, shape index: {}]
  %s7 = inlined_call_operand.vmem [shape: f32[1,128], index: 7, kind: input, shape index: {}]
  %s8 = inlined_call_operand.vmem [shape: f32[1,128], index: 8, kind: input, shape index: {}]
  %s9 = inlined_call_operand.hbm [shape: f32[256,128], index: 9, kind: output, shape index: {}]
  %s10 = sld [smem:[#allocation0]]
  $region81: #{tpu_custom_call.1} parent=0
    _
  %s12 = ssub.s32 1, %s10
  %s13 = scalar_select 0, %s12, %s10
  %14 = sst [smem:[#allocation2]] %s0
  %15 = sst [smem:[#allocation3]] %s1
  $region1: #{tpu_custom_call.1} parent=0
    #allocation4 [shape = 'u8[131072]{0}', space=vmem, size = 0x20000, scoped, tag = 'input window, operand 2']
    #allocation5 [shape = 's32[2]{0}', space=sflag, size = 0x8, scoped, tag = 'scoped memory for tpu_custom_call.1']
    #allocation6 [shape = 's32[2]{0}', space=sflag, size = 0x8, scoped, tag = 'scoped memory for tpu_custom_call.1']
    #allocation7 [shape = 'u8[65536]{0}', space=vmem, size = 0x10000, scoped, tag = 'input window, operand 3, single buffered']
    #allocation8 [shape = 's32[1]{0}', space=sflag, size = 0x4, scoped, tag = 'scoped memory for tpu_custom_call.1']
    #allocation9 [shape = 'u8[65536]{0}', space=vmem, size = 0x10000, scoped, tag = 'input window, operand 4, single buffered']
    #allocation10 [shape = 'u8[131072]{0}', space=vmem, size = 0x20000, scoped, tag = 'output window, operand 0']
    %16 = vsyncpa [#allocation5], 0
    %s17 = scalar_lea.sflag [#allocation5], 1
    %18 = vsyncpa %s17, 0
    %19 = vsyncpa [#allocation8], 0
    %20 = vsyncpa [#allocation6], 0
    %s21 = scalar_lea.sflag [#allocation6], 1
    %22 = vsyncpa %s21, 0
    loop: start=0, step=1, limit=4
    $region2: #{tpu_custom_call.1} parent=1 // loop_pre_header
      _
    $region3: #{tpu_custom_call.1} parent=1 // loop_header
      %s24 = sphi 0, %s28
      %p25 = scmp.ge.s32.totalorder %s24, 4
      %s32 = sphi 0, %s32
      %s34 = sphi 0, %s32
      %s35 = sphi 0, %s34
      %s49 = sphi 0, %s35
      %s53 = sphi 0, %s53
      %s55 = sphi 0, %s53
      %s56 = sphi 0, %s55
      %s70 = sphi 0, %s56
      %s76 = sphi 0, %s78
      %s79 = sphi 0, %s76
      %s80 = sphi 0, %s79
      %s96 = sphi 0, %s80
      %s100 = sphi 0, %s100
      %s102 = sphi 0, %s100
      %s103 = sphi 0, %s102
      %s117 = sphi 0, %s103
      %s121 = sphi 0, %s121
      %s123 = sphi 0, %s121
      %s124 = sphi 0, %s123
      %s138 = sphi 0, %s124
      %s142 = sphi 0, %s142
      %s144 = sphi 0, %s142
      %s145 = sphi 0, %s144
      %s159 = sphi 0, %s145
      %s163 = sphi 0, %s163
      %s165 = sphi 0, %s163
      %s166 = sphi 0, %s165
      %s180 = sphi 0, %s166
      %s184 = sphi 0, %s184
      %s186 = sphi 0, %s184
      %s187 = sphi 0, %s186
      %s201 = sphi 0, %s187
      %s205 = sphi 0, %s205
      %s207 = sphi 0, %s205
      %s208 = sphi 0, %s207
      %s222 = sphi 0, %s208
      %s228 = sphi 0, %s230
      %s231 = sphi 0, %s228
      %s232 = sphi 0, %s231
      %s248 = sphi 0, %s232
    $region4: #{tpu_custom_call.1} parent=1 // loop_header_branch
      %27 = sbr.rel (%p25) target = $region8
    $region5: #{tpu_custom_call.1} parent=1 // loop_body
      %s29 = ssub.s32 %s24, 1
      %s30 = ssub.s32 %s24, 2
      %s31 = sadd.s32 %s24, 1
      %s33 = sadd.s32 %s32, 1
      %p36 = scmp.eq.s32.totalorder %s24, 1
      %p37 = scmp.ne.s32.totalorder %s32, %s34
      %p38 = scmp.eq.s32.totalorder %s24, 0
      %p39 = por %p37, %p38
      %p40 = scmp.ne.s32.totalorder %s32, %s34
      %p41 = scmp.eq.s32.totalorder %s29, 1
      %p42 = por %p40, %p41
      %p43 = scmp.ne.s32.totalorder %s34, %s35
      %p44 = scmp.eq.s32.totalorder %s29, 0
      %p45 = por %p43, %p44
      %p46 = scmp.ne.s32.totalorder %s34, %s35
      %p47 = scmp.eq.s32.totalorder %s30, 1
      %p48 = por %p46, %p47
      %p50 = scmp.ne.s32.totalorder %s35, %s49
      %p51 = scmp.eq.s32.totalorder %s30, 0
      %p52 = por %p50, %p51
      %s54 = sadd.s32 %s53, 1
      %p57 = scmp.eq.s32.totalorder %s24, 1
      %p58 = scmp.ne.s32.totalorder %s53, %s55
      %p59 = scmp.eq.s32.totalorder %s24, 0
      %p60 = por %p58, %p59
      %p61 = scmp.ne.s32.totalorder %s53, %s55
      %p62 = scmp.eq.s32.totalorder %s29, 1
      %p63 = por %p61, %p62
      %p64 = scmp.ne.s32.totalorder %s55, %s56
      %p65 = scmp.eq.s32.totalorder %s29, 0
      %p66 = por %p64, %p65
      %p67 = scmp.ne.s32.totalorder %s55, %s56
      %p68 = scmp.eq.s32.totalorder %s30, 1
      %p69 = por %p67, %p68
      %p71 = scmp.ne.s32.totalorder %s56, %s70
      %p72 = scmp.eq.s32.totalorder %s30, 0
      %p73 = por %p71, %p72
      %s74 = ssub.s32 %s24, %s31
      %p75 = scmp.eq.s32.totalorder %s74, 0
      %s77 = sadd.s32 %s76, 1
      %s78 = scalar_select %p75, %s76, %s77
      %p81 = pneg %p75
      %p82 = scmp.eq.s32.totalorder %s24, 1
      %p83 = por %p81, %p82
      %p84 = scmp.ne.s32.totalorder %s76, %s79
      %p85 = scmp.eq.s32.totalorder %s24, 0
      %p86 = por %p84, %p85
      %p87 = scmp.ne.s32.totalorder %s76, %s79
      %p88 = scmp.eq.s32.totalorder %s29, 1
      %p89 = por %p87, %p88
      %p90 = scmp.ne.s32.totalorder %s79, %s80
      %p91 = scmp.eq.s32.totalorder %s29, 0
      %p92 = por %p90, %p91
      %p93 = scmp.ne.s32.totalorder %s79, %s80
      %p94 = scmp.eq.s32.totalorder %s30, 1
      %p95 = por %p93, %p94
      %p97 = scmp.ne.s32.totalorder %s80, %s96
      %p98 = scmp.eq.s32.totalorder %s30, 0
      %p99 = por %p97, %p98
      %s101 = sadd.s32 %s100, 1
      %p104 = scmp.eq.s32.totalorder %s24, 1
      %p105 = scmp.ne.s32.totalorder %s100, %s102
      %p106 = scmp.eq.s32.totalorder %s24, 0
      %p107 = por %p105, %p106
      %p108 = scmp.ne.s32.totalorder %s100, %s102
      %p109 = scmp.eq.s32.totalorder %s29, 1
      %p110 = por %p108, %p109
      %p111 = scmp.ne.s32.totalorder %s102, %s103
      %p112 = scmp.eq.s32.totalorder %s29, 0
      %p113 = por %p111, %p112
      %p114 = scmp.ne.s32.totalorder %s102, %s103
      %p115 = scmp.eq.s32.totalorder %s30, 1
      %p116 = por %p114, %p115
      %p118 = scmp.ne.s32.totalorder %s103, %s117
      %p119 = scmp.eq.s32.totalorder %s30, 0
      %p120 = por %p118, %p119
      %s122 = sadd.s32 %s121, 1
      %p125 = scmp.eq.s32.totalorder %s24, 1
      %p126 = scmp.ne.s32.totalorder %s121, %s123
      %p127 = scmp.eq.s32.totalorder %s24, 0
      %p128 = por %p126, %p127
      %p129 = scmp.ne.s32.totalorder %s121, %s123
      %p130 = scmp.eq.s32.totalorder %s29, 1
      %p131 = por %p129, %p130
      %p132 = scmp.ne.s32.totalorder %s123, %s124
      %p133 = scmp.eq.s32.totalorder %s29, 0
      %p134 = por %p132, %p133
      %p135 = scmp.ne.s32.totalorder %s123, %s124
      %p136 = scmp.eq.s32.totalorder %s30, 1
      %p137 = por %p135, %p136
      %p139 = scmp.ne.s32.totalorder %s124, %s138
      %p140 = scmp.eq.s32.totalorder %s30, 0
      %p141 = por %p139, %p140
      %s143 = sadd.s32 %s142, 1
      %p146 = scmp.eq.s32.totalorder %s24, 1
      %p147 = scmp.ne.s32.totalorder %s142, %s144
      %p148 = scmp.eq.s32.totalorder %s24, 0
      %p149 = por %p147, %p148
      %p150 = scmp.ne.s32.totalorder %s142, %s144
      %p151 = scmp.eq.s32.totalorder %s29, 1
      %p152 = por %p150, %p151
      %p153 = scmp.ne.s32.totalorder %s144, %s145
      %p154 = scmp.eq.s32.totalorder %s29, 0
      %p155 = por %p153, %p154
      %p156 = scmp.ne.s32.totalorder %s144, %s145
      %p157 = scmp.eq.s32.totalorder %s30, 1
      %p158 = por %p156, %p157
      %p160 = scmp.ne.s32.totalorder %s145, %s159
      %p161 = scmp.eq.s32.totalorder %s30, 0
      %p162 = por %p160, %p161
      %s164 = sadd.s32 %s163, 1
      %p167 = scmp.eq.s32.totalorder %s24, 1
      %p168 = scmp.ne.s32.totalorder %s163, %s165
      %p169 = scmp.eq.s32.totalorder %s24, 0
      %p170 = por %p168, %p169
      %p171 = scmp.ne.s32.totalorder %s163, %s165
      %p172 = scmp.eq.s32.totalorder %s29, 1
      %p173 = por %p171, %p172
      %p174 = scmp.ne.s32.totalorder %s165, %s166
      %p175 = scmp.eq.s32.totalorder %s29, 0
      %p176 = por %p174, %p175
      %p177 = scmp.ne.s32.totalorder %s165, %s166
      %p178 = scmp.eq.s32.totalorder %s30, 1
      %p179 = por %p177, %p178
      %p181 = scmp.ne.s32.totalorder %s166, %s180
      %p182 = scmp.eq.s32.totalorder %s30, 0
      %p183 = por %p181, %p182
      %s185 = sadd.s32 %s184, 1
      %p188 = scmp.eq.s32.totalorder %s24, 1
      %p189 = scmp.ne.s32.totalorder %s184, %s186
      %p190 = scmp.eq.s32.totalorder %s24, 0
      %p191 = por %p189, %p190
      %p192 = scmp.ne.s32.totalorder %s184, %s186
      %p193 = scmp.eq.s32.totalorder %s29, 1
      %p194 = por %p192, %p193
      %p195 = scmp.ne.s32.totalorder %s186, %s187
      %p196 = scmp.eq.s32.totalorder %s29, 0
      %p197 = por %p195, %p196
      %p198 = scmp.ne.s32.totalorder %s186, %s187
      %p199 = scmp.eq.s32.totalorder %s30, 1
      %p200 = por %p198, %p199
      %p202 = scmp.ne.s32.totalorder %s187, %s201
      %p203 = scmp.eq.s32.totalorder %s30, 0
      %p204 = por %p202, %p203
      %s206 = sadd.s32 %s205, 1
      %p209 = scmp.eq.s32.totalorder %s24, 1
      %p210 = scmp.ne.s32.totalorder %s205, %s207
      %p211 = scmp.eq.s32.totalorder %s24, 0
      %p212 = por %p210, %p211
      %p213 = scmp.ne.s32.totalorder %s205, %s207
      %p214 = scmp.eq.s32.totalorder %s29, 1
      %p215 = por %p213, %p214
      %p216 = scmp.ne.s32.totalorder %s207, %s208
      %p217 = scmp.eq.s32.totalorder %s29, 0
      %p218 = por %p216, %p217
      %p219 = scmp.ne.s32.totalorder %s207, %s208
      %p220 = scmp.eq.s32.totalorder %s30, 1
      %p221 = por %p219, %p220
      %p223 = scmp.ne.s32.totalorder %s208, %s222
      %p224 = scmp.eq.s32.totalorder %s30, 0
      %p225 = por %p223, %p224
      %s226 = ssub.s32 %s24, %s31
      %p227 = scmp.eq.s32.totalorder %s226, 0
      %s229 = sadd.s32 %s228, 1
      %s230 = scalar_select %p227, %s228, %s229
      %p233 = pneg %p227
      %p234 = scmp.eq.s32.totalorder %s24, 1
      %p235 = por %p233, %p234
      %p236 = scmp.ne.s32.totalorder %s228, %s231
      %p237 = scmp.eq.s32.totalorder %s24, 0
      %p238 = por %p236, %p237
      %p239 = scmp.ne.s32.totalorder %s228, %s231
      %p240 = scmp.eq.s32.totalorder %s29, 1
      %p241 = por %p239, %p240
      %p242 = scmp.ne.s32.totalorder %s231, %s232
      %p243 = scmp.eq.s32.totalorder %s29, 0
      %p244 = por %p242, %p243
      %p245 = scmp.ne.s32.totalorder %s231, %s232
      %p246 = scmp.eq.s32.totalorder %s30, 1
      %p247 = por %p245, %p246
      %p249 = scmp.ne.s32.totalorder %s232, %s248
      %p250 = scmp.eq.s32.totalorder %s30, 0
      %p251 = por %p249, %p250
      %p252 = scmp.le.s32.totalorder 1, %s24
      %p253 = scmp.lt.s32.totalorder %s24, 3
      %p254 = pnand %p252, %p253
      %p255 = pneg %p254
      // Predicated region
      $region9: #{tpu_custom_call.1} parent=5 // pred_check
        _
      $region10: #{tpu_custom_call.1} parent=5 // pred_check_branch
        %257 = sbr.rel (%p254) target = $region12
      $region11: #{tpu_custom_call.1} parent=5 // pred_region
        %s258 = ssub.s32 %s24, 1
        // Predicated region
        $region13: #{tpu_custom_call.1} parent=11 // pred_check
          %p259 = pneg %p45
        $region14: #{tpu_custom_call.1} parent=11 // pred_check_branch
          %261 = sbr.rel (%p259) target = $region16
        $region15: #{tpu_custom_call.1} parent=11 // pred_region
          _
        $region16: #{tpu_custom_call.1} parent=11 // pred_fallthru
          _
        // Predicated region
        $region17: #{tpu_custom_call.1} parent=11 // pred_check
          %p262 = pneg %p66
        $region18: #{tpu_custom_call.1} parent=11 // pred_check_branch
          %264 = sbr.rel (%p262) target = $region20
        $region19: #{tpu_custom_call.1} parent=11 // pred_region
          _
        $region20: #{tpu_custom_call.1} parent=11 // pred_fallthru
          _
        // Predicated region
        $region21: #{tpu_custom_call.1} parent=11 // pred_check
          %p265 = pneg %p113
        $region22: #{tpu_custom_call.1} parent=11 // pred_check_branch
          %267 = sbr.rel (%p265) target = $region24
        $region23: #{tpu_custom_call.1} parent=11 // pred_region
          %s269 = ssub.s32 2048, 2048
          %270 = vsyncadd [#allocation8], %s269
          %s271 = sshll.u32 [#allocation7], 4
          %s272 = int_to_ptr.vmem [resolvable:$true] %s271
          %277 = dma.hbm_to_vmem [thread:$0]  %s3, 2048, %s272, [#allocation8], 128, 128, 8
        $region24: #{tpu_custom_call.1} parent=11 // pred_fallthru
          _
        // Predicated region
        $region25: #{tpu_custom_call.1} parent=11 // pred_check
          %p278 = pneg %p134
        $region26: #{tpu_custom_call.1} parent=11 // pred_check_branch
          %280 = sbr.rel (%p278) target = $region28
        $region27: #{tpu_custom_call.1} parent=11 // pred_region
          %s282 = ssub.s32 2048, 2048
          %283 = vsyncadd [#allocation8], %s282
          %s284 = sshll.u32 [#allocation9], 4
          %s285 = int_to_ptr.vmem [resolvable:$true] %s284
          %290 = dma.hbm_to_vmem [thread:$0]  %s4, 2048, %s285, [#allocation8], 128, 128, 8
        $region28: #{tpu_custom_call.1} parent=11 // pred_fallthru
          _
        // Predicated region
        $region29: #{tpu_custom_call.1} parent=11 // pred_check
          %p291 = pneg %p155
        $region30: #{tpu_custom_call.1} parent=11 // pred_check_branch
          %293 = sbr.rel (%p291) target = $region32
        $region31: #{tpu_custom_call.1} parent=11 // pred_region
          _
        $region32: #{tpu_custom_call.1} parent=11 // pred_fallthru
          _
        // Predicated region
        $region33: #{tpu_custom_call.1} parent=11 // pred_check
          %p294 = pneg %p176
        $region34: #{tpu_custom_call.1} parent=11 // pred_check_branch
          %296 = sbr.rel (%p294) target = $region36
        $region35: #{tpu_custom_call.1} parent=11 // pred_region
          _
        $region36: #{tpu_custom_call.1} parent=11 // pred_fallthru
          _
        // Predicated region
        $region37: #{tpu_custom_call.1} parent=11 // pred_check
          %p297 = pneg %p197
        $region38: #{tpu_custom_call.1} parent=11 // pred_check_branch
          %299 = sbr.rel (%p297) target = $region40
        $region39: #{tpu_custom_call.1} parent=11 // pred_region
          _
        $region40: #{tpu_custom_call.1} parent=11 // pred_fallthru
          _
        // Predicated region
        $region41: #{tpu_custom_call.1} parent=11 // pred_check
          %p300 = pneg %p218
        $region42: #{tpu_custom_call.1} parent=11 // pred_check_branch
          %302 = sbr.rel (%p300) target = $region44
        $region43: #{tpu_custom_call.1} parent=11 // pred_region
          _
        $region44: #{tpu_custom_call.1} parent=11 // pred_fallthru
          _
      $region12: #{tpu_custom_call.1} parent=5 // pred_fallthru
        _
      %p303 = scmp.lt.s32.totalorder %s24, 2
      // Predicated region
      $region45: #{tpu_custom_call.1} parent=5 // pred_check
        %p304 = pneg %p303
      $region46: #{tpu_custom_call.1} parent=5 // pred_check_branch
        %306 = sbr.rel (%p304) target = $region48
      $region47: #{tpu_custom_call.1} parent=5 // pred_region
        // Predicated region
        $region49: #{tpu_custom_call.1} parent=47 // pred_check
          %p307 = pneg %p86
        $region50: #{tpu_custom_call.1} parent=47 // pred_check_branch
          %309 = sbr.rel (%p307) target = $region52
        $region51: #{tpu_custom_call.1} parent=47 // pred_region
          %s310 = sand.u32 %s76, 1
          %s311 = scalar_lea.sflag [#allocation5], %s310
          %s312 = sand.u32 %s76, 1
          %s313 = smul.addr %s312, 128
          %s314 = scalar_lea.vmem [#allocation4], %s313
          %s315 = smul.u32 16, %s24
          %s317 = ssub.s32 2048, 2048
          %318 = vsyncadd %s311, %s317
          %s319 = smul.addr %s315, 128
          %s320 = scalar_lea.hbm %s2, %s319
          %s321 = sshll.u32 %s314, 4
          %s322 = int_to_ptr.vmem [resolvable:$true] %s321
          %327 = dma.hbm_to_vmem [thread:$0]  %s320, 2048, %s322, %s311, 128, 128, 8
        $region52: #{tpu_custom_call.1} parent=47 // pred_fallthru
          _
      $region48: #{tpu_custom_call.1} parent=5 // pred_fallthru
        _
      %p328 = scmp.le.s32.totalorder 1, %s24
      %p329 = scmp.lt.s32.totalorder %s24, 3
      %p330 = pnand %p328, %p329
      %p331 = pneg %p330
      // Predicated region
      $region53: #{tpu_custom_call.1} parent=5 // pred_check
        _
      $region54: #{tpu_custom_call.1} parent=5 // pred_check_branch
        %333 = sbr.rel (%p330) target = $region56
      $region55: #{tpu_custom_call.1} parent=5 // pred_region
        %s334 = ssub.s32 %s24, 1
        %s335 = sand.u32 %s79, 1
        %s336 = scalar_lea.sflag [#allocation5], %s335
        %s337 = sand.u32 %s79, 1
        %s338 = smul.addr %s337, 128
        %s339 = scalar_lea.vmem [#allocation4], %s338
        // Predicated region
        $region57: #{tpu_custom_call.1} parent=55 // pred_check
          %p340 = pneg %p92
        $region58: #{tpu_custom_call.1} parent=55 // pred_check_branch
          %342 = sbr.rel (%p340) target = $region60
        $region59: #{tpu_custom_call.1} parent=55 // pred_region
          %343 = dma.done %s336, 2048
        $region60: #{tpu_custom_call.1} parent=55 // pred_fallthru
          _
        // Predicated region
        $region61: #{tpu_custom_call.1} parent=55 // pred_check
          %p344 = pneg %p113
        $region62: #{tpu_custom_call.1} parent=55 // pred_check_branch
          %346 = sbr.rel (%p344) target = $region64
        $region63: #{tpu_custom_call.1} parent=55 // pred_region
          %347 = dma.done [#allocation8], 2048
        $region64: #{tpu_custom_call.1} parent=55 // pred_fallthru
          _
        // Predicated region
        $region65: #{tpu_custom_call.1} parent=55 // pred_check
          %p348 = pneg %p134
        $region66: #{tpu_custom_call.1} parent=55 // pred_check_branch
          %350 = sbr.rel (%p348) target = $region68
        $region67: #{tpu_custom_call.1} parent=55 // pred_region
          %351 = dma.done [#allocation8], 2048
        $region68: #{tpu_custom_call.1} parent=55 // pred_fallthru
          _
        %p352 = pneg %p45
        %p353 = pneg %p42
        %p354 = pneg %p66
        %p355 = pneg %p63
        %s356 = sand.u32 %s79, 1
        %s357 = scalar_lea.sflag [#allocation5], %s356
        %s358 = sand.u32 %s79, 1
        %s359 = smul.addr %s358, 128
        %s360 = scalar_lea.vmem [#allocation4], %s359
        %p361 = pneg %p92
        %p362 = pneg %p89
        %p363 = pneg %p113
        %p364 = pneg %p110
        %p365 = pneg %p134
        %p366 = pneg %p131
        %p367 = pneg %p155
        %p368 = pneg %p152
        %p369 = pneg %p176
        %p370 = pneg %p173
        %p371 = pneg %p197
        %p372 = pneg %p194
        %p373 = pneg %p218
        %p374 = pneg %p215
        %p375 = pneg %p244
        %p376 = pneg %p241
        %s377 = sand.u32 %s231, 1
        %s378 = scalar_lea.sflag [#allocation6], %s377
        %s379 = sand.u32 %s231, 1
        %s380 = smul.addr %s379, 128
        %s381 = scalar_lea.vmem [#allocation10], %s380
        %s382 = smul.u32 16, %s29
        %s383 = smul.u32 16, %s29
        %v384 = vld [vmem:[%s339] sm:$0xff]
        %v385 = vld [vmem:[%s339 + $0x8] sm:$0xff]
        %v386 = vld [vmem:[%s339 + $0x10] sm:$0xff]
        %v387 = vld [vmem:[%s339 + $0x18] sm:$0xff]
        %v388 = vld [vmem:[%s339 + $0x20] sm:$0xff]
        %v389 = vld [vmem:[%s339 + $0x28] sm:$0xff]
        %v390 = vld [vmem:[%s339 + $0x30] sm:$0xff]
        %v391 = vld [vmem:[%s339 + $0x38] sm:$0xff]
        %v392 = vld [vmem:[%s339 + $0x40] sm:$0xff]
        %v393 = vld [vmem:[%s339 + $0x48] sm:$0xff]
        %v394 = vld [vmem:[%s339 + $0x50] sm:$0xff]
        %v395 = vld [vmem:[%s339 + $0x58] sm:$0xff]
        %v396 = vld [vmem:[%s339 + $0x60] sm:$0xff]
        %v397 = vld [vmem:[%s339 + $0x68] sm:$0xff]
        %v398 = vld [vmem:[%s339 + $0x70] sm:$0xff]
        %v399 = vld [vmem:[%s339 + $0x78] sm:$0xff]
        %v400 = vld [vmem:[#allocation7] sm:$0xff]
        %v401 = vld [vmem:[#allocation7 + $0x8] sm:$0xff]
        %v402 = vld [vmem:[#allocation7 + $0x10] sm:$0xff]
        %v403 = vld [vmem:[#allocation7 + $0x18] sm:$0xff]
        %v404 = vld [vmem:[#allocation7 + $0x20] sm:$0xff]
        %v405 = vld [vmem:[#allocation7 + $0x28] sm:$0xff]
        %v406 = vld [vmem:[#allocation7 + $0x30] sm:$0xff]
        %v407 = vld [vmem:[#allocation7 + $0x38] sm:$0xff]
        %v408 = vld [vmem:[#allocation7 + $0x40] sm:$0xff]
        %v409 = vld [vmem:[#allocation7 + $0x48] sm:$0xff]
        %v410 = vld [vmem:[#allocation7 + $0x50] sm:$0xff]
        %v411 = vld [vmem:[#allocation7 + $0x58] sm:$0xff]
        %v412 = vld [vmem:[#allocation7 + $0x60] sm:$0xff]
        %v413 = vld [vmem:[#allocation7 + $0x68] sm:$0xff]
        %v414 = vld [vmem:[#allocation7 + $0x70] sm:$0xff]
        %v415 = vld [vmem:[#allocation7 + $0x78] sm:$0xff]
        %416 = vmatprep.subr.mxu0 0.0
        %417 = vmatpush1.msra.mxu0 %v415
        %418 = vmatprep.subr.mxu0 0.0
        %419 = vmatpush1.msra.mxu0 %v414
        %420 = vmatprep.subr.mxu0 0.0
        %421 = vmatpush1.msra.mxu0 %v413
        %422 = vmatprep.subr.mxu0 0.0
        %423 = vmatpush1.msra.mxu0 %v412
        %424 = vmatprep.subr.mxu0 0.0
        %425 = vmatpush1.msra.mxu0 %v411
        %426 = vmatprep.subr.mxu0 0.0
        %427 = vmatpush1.msra.mxu0 %v410
        %428 = vmatprep.subr.mxu0 0.0
        %429 = vmatpush1.msra.mxu0 %v409
        %430 = vmatprep.subr.mxu0 0.0
        %431 = vmatpush1.msra.mxu0 %v408
        %432 = vmatprep.subr.mxu0 0.0
        %433 = vmatpush1.msra.mxu0 %v407
        %434 = vmatprep.subr.mxu0 0.0
        %435 = vmatpush1.msra.mxu0 %v406
        %436 = vmatprep.subr.mxu0 0.0
        %437 = vmatpush1.msra.mxu0 %v405
        %438 = vmatprep.subr.mxu0 0.0
        %439 = vmatpush1.msra.mxu0 %v404
        %440 = vmatprep.subr.mxu0 0.0
        %441 = vmatpush1.msra.mxu0 %v403
        %442 = vmatprep.subr.mxu0 0.0
        %443 = vmatpush1.msra.mxu0 %v402
        %444 = vmatprep.subr.mxu0 0.0
        %445 = vmatpush1.msra.mxu0 %v401
        %446 = vmatprep.subr.mxu0 0.0
        %447 = vmatpush1.msra.mxu0 %v400
        %448 = vmatprep.subr.mxu0 0.0
        %449 = vmatpush2.msra.mxu0 0.0
        %450 = vmatprep.subr.mxu0 0.0
        %451 = vmatpush2.msra.mxu0 0.0
        %452 = vmatprep.subr.mxu0 0.0
        %453 = vmatpush2.msra.mxu0 0.0
        %454 = vmatprep.subr.mxu0 0.0
        %455 = vmatpush2.msra.mxu0 0.0
        %456 = vmatprep.subr.mxu0 0.0
        %457 = vmatpush2.msra.mxu0 0.0
        %458 = vmatprep.subr.mxu0 0.0
        %459 = vmatpush2.msra.mxu0 0.0
        %460 = vmatprep.subr.mxu0 0.0
        %461 = vmatpush2.msra.mxu0 0.0
        %462 = vmatprep.subr.mxu0 0.0
        %463 = vmatpush2.msra.mxu0 0.0
        %464 = vmatprep.subr.mxu0 0.0
        %465 = vmatpush2.msra.mxu0 0.0
        %466 = vmatprep.subr.mxu0 0.0
        %467 = vmatpush2.msra.mxu0 0.0
        %468 = vmatprep.subr.mxu0 0.0
        %469 = vmatpush2.msra.mxu0 0.0
        %470 = vmatprep.subr.mxu0 0.0
        %471 = vmatpush2.msra.mxu0 0.0
        %472 = vmatprep.subr.mxu0 0.0
        %473 = vmatpush2.msra.mxu0 0.0
        %474 = vmatprep.subr.mxu0 0.0
        %475 = vmatpush2.msra.mxu0 0.0
        %476 = vmatprep.subr.mxu0 0.0
        %477 = vmatpush2.msra.mxu0 0.0
        %478 = vmatprep.subr.mxu0 0.0
        %479 = vmatpush2.msra.mxu0 0.0
        %480 = vmatprep.mubr.f32.mxu0 0.0
        %481 = vmatmul.mubr.f32.gmra.mxu0 %v384
        %v482 = vpop.f32.mrf.mxu0
        %v483 = vadd.f32 0.0, %v482
        %v484 = vpop.f32.mrf.mxu0
        %485 = vmatprep.mubr.f32.mxu0 0.0
        %486 = vmatmul.mubr.f32.gmra.mxu0 %v385
        %v487 = vpop.f32.mrf.mxu0
        %v488 = vadd.f32 0.0, %v487
        %v489 = vpop.f32.mrf.mxu0
        %490 = vmatprep.mubr.f32.mxu0 0.0
        %491 = vmatmul.mubr.f32.gmra.mxu0 %v386
        %v492 = vpop.f32.mrf.mxu0
        %v493 = vadd.f32 0.0, %v492
        %v494 = vpop.f32.mrf.mxu0
        %495 = vmatprep.mubr.f32.mxu0 0.0
        %496 = vmatmul.mubr.f32.gmra.mxu0 %v387
        %v497 = vpop.f32.mrf.mxu0
        %v498 = vadd.f32 0.0, %v497
        %v499 = vpop.f32.mrf.mxu0
        %500 = vmatprep.mubr.f32.mxu0 0.0
        %501 = vmatmul.mubr.f32.gmra.mxu0 %v388
        %v502 = vpop.f32.mrf.mxu0
        %v503 = vadd.f32 0.0, %v502
        %v504 = vpop.f32.mrf.mxu0
        %505 = vmatprep.mubr.f32.mxu0 0.0
        %506 = vmatmul.mubr.f32.gmra.mxu0 %v389
        %v507 = vpop.f32.mrf.mxu0
        %v508 = vadd.f32 0.0, %v507
        %v509 = vpop.f32.mrf.mxu0
        %510 = vmatprep.mubr.f32.mxu0 0.0
        %511 = vmatmul.mubr.f32.gmra.mxu0 %v390
        %v512 = vpop.f32.mrf.mxu0
        %v513 = vadd.f32 0.0, %v512
        %v514 = vpop.f32.mrf.mxu0
        %515 = vmatprep.mubr.f32.mxu0 0.0
        %516 = vmatmul.mubr.f32.gmra.mxu0 %v391
        %v517 = vpop.f32.mrf.mxu0
        %v518 = vadd.f32 0.0, %v517
        %v519 = vpop.f32.mrf.mxu0
        %520 = vmatprep.mubr.f32.mxu0 0.0
        %521 = vmatmul.mubr.f32.gmra.mxu0 %v392
        %v522 = vpop.f32.mrf.mxu0
        %v523 = vadd.f32 0.0, %v522
        %v524 = vpop.f32.mrf.mxu0
        %525 = vmatprep.mubr.f32.mxu0 0.0
        %526 = vmatmul.mubr.f32.gmra.mxu0 %v393
        %v527 = vpop.f32.mrf.mxu0
        %v528 = vadd.f32 0.0, %v527
        %v529 = vpop.f32.mrf.mxu0
        %530 = vmatprep.mubr.f32.mxu0 0.0
        %531 = vmatmul.mubr.f32.gmra.mxu0 %v394
        %v532 = vpop.f32.mrf.mxu0
        %v533 = vadd.f32 0.0, %v532
        %v534 = vpop.f32.mrf.mxu0
        %535 = vmatprep.mubr.f32.mxu0 0.0
        %536 = vmatmul.mubr.f32.gmra.mxu0 %v395
        %v537 = vpop.f32.mrf.mxu0
        %v538 = vadd.f32 0.0, %v537
        %v539 = vpop.f32.mrf.mxu0
        %540 = vmatprep.mubr.f32.mxu0 0.0
        %541 = vmatmul.mubr.f32.gmra.mxu0 %v396
        %v542 = vpop.f32.mrf.mxu0
        %v543 = vadd.f32 0.0, %v542
        %v544 = vpop.f32.mrf.mxu0
        %545 = vmatprep.mubr.f32.mxu0 0.0
        %546 = vmatmul.mubr.f32.gmra.mxu0 %v397
        %v547 = vpop.f32.mrf.mxu0
        %v548 = vadd.f32 0.0, %v547
        %v549 = vpop.f32.mrf.mxu0
        %550 = vmatprep.mubr.f32.mxu0 0.0
        %551 = vmatmul.mubr.f32.gmra.mxu0 %v398
        %v552 = vpop.f32.mrf.mxu0
        %v553 = vadd.f32 0.0, %v552
        %v554 = vpop.f32.mrf.mxu0
        %555 = vmatprep.mubr.f32.mxu0 0.0
        %556 = vmatmul.mubr.f32.gmra.mxu0 %v399
        %v557 = vpop.f32.mrf.mxu0
        %v558 = vadd.f32 0.0, %v557
        %v559 = vpop.f32.mrf.mxu0
        %560 = vdwg.mxu0
        %s561 = sld [smem:[#allocation2]]
        %v562 = vstv %s561
        %v563 = vmul.f32 %v562, %v483
        %v564 = vmul.f32 %v562, %v488
        %v565 = vmul.f32 %v562, %v493
        %v566 = vmul.f32 %v562, %v498
        %v567 = vmul.f32 %v562, %v503
        %v568 = vmul.f32 %v562, %v508
        %v569 = vmul.f32 %v562, %v513
        %v570 = vmul.f32 %v562, %v518
        %v571 = vmul.f32 %v562, %v523
        %v572 = vmul.f32 %v562, %v528
        %v573 = vmul.f32 %v562, %v533
        %v574 = vmul.f32 %v562, %v538
        %v575 = vmul.f32 %v562, %v543
        %v576 = vmul.f32 %v562, %v548
        %v577 = vmul.f32 %v562, %v553
        %v578 = vmul.f32 %v562, %v558
        %v579 = vtanh.pop %v563
        %v580 = vtanh.pop %v564
        %v581 = vtanh.pop %v565
        %v582 = vtanh.pop %v566
        %v583 = vtanh.pop %v567
        %v584 = vtanh.pop %v568
        %v585 = vtanh.pop %v569
        %v586 = vtanh.pop %v570
        %v587 = vtanh.pop %v571
        %v588 = vtanh.pop %v572
        %v589 = vtanh.pop %v573
        %v590 = vtanh.pop %v574
        %v591 = vtanh.pop %v575
        %v592 = vtanh.pop %v576
        %v593 = vtanh.pop %v577
        %v594 = vtanh.pop %v578
        %v595 = vld [vmem:[%s5] sm:$0x1]
        %v597 = vlaneseq
        %v598 = vshrl.u32 %v597, 7
        %v599 = vsub.s32 0, %v598
        %v600 = vrot.slane %v595, %v599
        %v602 = vmul.f32 %v579, %v600
        %v603 = vmul.f32 %v580, %v600
        %v604 = vmul.f32 %v581, %v600
        %v605 = vmul.f32 %v582, %v600
        %v606 = vmul.f32 %v583, %v600
        %v607 = vmul.f32 %v584, %v600
        %v608 = vmul.f32 %v585, %v600
        %v609 = vmul.f32 %v586, %v600
        %v610 = vmul.f32 %v587, %v600
        %v611 = vmul.f32 %v588, %v600
        %v612 = vmul.f32 %v589, %v600
        %v613 = vmul.f32 %v590, %v600
        %v614 = vmul.f32 %v591, %v600
        %v615 = vmul.f32 %v592, %v600
        %v616 = vmul.f32 %v593, %v600
        %v617 = vmul.f32 %v594, %v600
        %v618 = vld [vmem:[%s6] sm:$0x1]
        %v620 = vlaneseq
        %v621 = vshrl.u32 %v620, 7
        %v622 = vsub.s32 0, %v621
        %v623 = vrot.slane %v618, %v622
        %v625 = vadd.f32 %v602, %v623
        %v626 = vadd.f32 %v603, %v623
        %v627 = vadd.f32 %v604, %v623
        %v628 = vadd.f32 %v605, %v623
        %v629 = vadd.f32 %v606, %v623
        %v630 = vadd.f32 %v607, %v623
        %v631 = vadd.f32 %v608, %v623
        %v632 = vadd.f32 %v609, %v623
        %v633 = vadd.f32 %v610, %v623
        %v634 = vadd.f32 %v611, %v623
        %v635 = vadd.f32 %v612, %v623
        %v636 = vadd.f32 %v613, %v623
        %v637 = vadd.f32 %v614, %v623
        %v638 = vadd.f32 %v615, %v623
        %v639 = vadd.f32 %v616, %v623
        %v640 = vadd.f32 %v617, %v623
        %v641 = vmax.f32 %v625, 0.0
        %v642 = vmax.f32 %v626, 0.0
        %v643 = vmax.f32 %v627, 0.0
        %v644 = vmax.f32 %v628, 0.0
        %v645 = vmax.f32 %v629, 0.0
        %v646 = vmax.f32 %v630, 0.0
        %v647 = vmax.f32 %v631, 0.0
        %v648 = vmax.f32 %v632, 0.0
        %v649 = vmax.f32 %v633, 0.0
        %v650 = vmax.f32 %v634, 0.0
        %v651 = vmax.f32 %v635, 0.0
        %v652 = vmax.f32 %v636, 0.0
        %v653 = vmax.f32 %v637, 0.0
        %v654 = vmax.f32 %v638, 0.0
        %v655 = vmax.f32 %v639, 0.0
        %v656 = vmax.f32 %v640, 0.0
        %v657 = vld [vmem:[#allocation9] sm:$0xff]
        %v658 = vld [vmem:[#allocation9 + $0x8] sm:$0xff]
        %v659 = vld [vmem:[#allocation9 + $0x10] sm:$0xff]
        %v660 = vld [vmem:[#allocation9 + $0x18] sm:$0xff]
        %v661 = vld [vmem:[#allocation9 + $0x20] sm:$0xff]
        %v662 = vld [vmem:[#allocation9 + $0x28] sm:$0xff]
        %v663 = vld [vmem:[#allocation9 + $0x30] sm:$0xff]
        %v664 = vld [vmem:[#allocation9 + $0x38] sm:$0xff]
        %v665 = vld [vmem:[#allocation9 + $0x40] sm:$0xff]
        %v666 = vld [vmem:[#allocation9 + $0x48] sm:$0xff]
        %v667 = vld [vmem:[#allocation9 + $0x50] sm:$0xff]
        %v668 = vld [vmem:[#allocation9 + $0x58] sm:$0xff]
        %v669 = vld [vmem:[#allocation9 + $0x60] sm:$0xff]
        %v670 = vld [vmem:[#allocation9 + $0x68] sm:$0xff]
        %v671 = vld [vmem:[#allocation9 + $0x70] sm:$0xff]
        %v672 = vld [vmem:[#allocation9 + $0x78] sm:$0xff]
        %673 = vmatprep.subr.mxu0 0.0
        %674 = vmatpush1.msra.mxu0 %v672
        %675 = vmatprep.subr.mxu0 0.0
        %676 = vmatpush1.msra.mxu0 %v671
        %677 = vmatprep.subr.mxu0 0.0
        %678 = vmatpush1.msra.mxu0 %v670
        %679 = vmatprep.subr.mxu0 0.0
        %680 = vmatpush1.msra.mxu0 %v669
        %681 = vmatprep.subr.mxu0 0.0
        %682 = vmatpush1.msra.mxu0 %v668
        %683 = vmatprep.subr.mxu0 0.0
        %684 = vmatpush1.msra.mxu0 %v667
        %685 = vmatprep.subr.mxu0 0.0
        %686 = vmatpush1.msra.mxu0 %v666
        %687 = vmatprep.subr.mxu0 0.0
        %688 = vmatpush1.msra.mxu0 %v665
        %689 = vmatprep.subr.mxu0 0.0
        %690 = vmatpush1.msra.mxu0 %v664
        %691 = vmatprep.subr.mxu0 0.0
        %692 = vmatpush1.msra.mxu0 %v663
        %693 = vmatprep.subr.mxu0 0.0
        %694 = vmatpush1.msra.mxu0 %v662
        %695 = vmatprep.subr.mxu0 0.0
        %696 = vmatpush1.msra.mxu0 %v661
        %697 = vmatprep.subr.mxu0 0.0
        %698 = vmatpush1.msra.mxu0 %v660
        %699 = vmatprep.subr.mxu0 0.0
        %700 = vmatpush1.msra.mxu0 %v659
        %701 = vmatprep.subr.mxu0 0.0
        %702 = vmatpush1.msra.mxu0 %v658
        %703 = vmatprep.subr.mxu0 0.0
        %704 = vmatpush1.msra.mxu0 %v657
        %705 = vmatprep.subr.mxu0 0.0
        %706 = vmatpush2.msra.mxu0 0.0
        %707 = vmatprep.subr.mxu0 0.0
        %708 = vmatpush2.msra.mxu0 0.0
        %709 = vmatprep.subr.mxu0 0.0
        %710 = vmatpush2.msra.mxu0 0.0
        %711 = vmatprep.subr.mxu0 0.0
        %712 = vmatpush2.msra.mxu0 0.0
        %713 = vmatprep.subr.mxu0 0.0
        %714 = vmatpush2.msra.mxu0 0.0
        %715 = vmatprep.subr.mxu0 0.0
        %716 = vmatpush2.msra.mxu0 0.0
        %717 = vmatprep.subr.mxu0 0.0
        %718 = vmatpush2.msra.mxu0 0.0
        %719 = vmatprep.subr.mxu0 0.0
        %720 = vmatpush2.msra.mxu0 0.0
        %721 = vmatprep.subr.mxu0 0.0
        %722 = vmatpush2.msra.mxu0 0.0
        %723 = vmatprep.subr.mxu0 0.0
        %724 = vmatpush2.msra.mxu0 0.0
        %725 = vmatprep.subr.mxu0 0.0
        %726 = vmatpush2.msra.mxu0 0.0
        %727 = vmatprep.subr.mxu0 0.0
        %728 = vmatpush2.msra.mxu0 0.0
        %729 = vmatprep.subr.mxu0 0.0
        %730 = vmatpush2.msra.mxu0 0.0
        %731 = vmatprep.subr.mxu0 0.0
        %732 = vmatpush2.msra.mxu0 0.0
        %733 = vmatprep.subr.mxu0 0.0
        %734 = vmatpush2.msra.mxu0 0.0
        %735 = vmatprep.subr.mxu0 0.0
        %736 = vmatpush2.msra.mxu0 0.0
        %737 = vmatprep.mubr.f32.mxu0 0.0
        %738 = vmatmul.mubr.f32.gmra.mxu0 %v641
        %v739 = vpop.f32.mrf.mxu0
        %v740 = vadd.f32 0.0, %v739
        %v741 = vpop.f32.mrf.mxu0
        %742 = vmatprep.mubr.f32.mxu0 0.0
        %743 = vmatmul.mubr.f32.gmra.mxu0 %v642
        %v744 = vpop.f32.mrf.mxu0
        %v745 = vadd.f32 0.0, %v744
        %v746 = vpop.f32.mrf.mxu0
        %747 = vmatprep.mubr.f32.mxu0 0.0
        %748 = vmatmul.mubr.f32.gmra.mxu0 %v643
        %v749 = vpop.f32.mrf.mxu0
        %v750 = vadd.f32 0.0, %v749
        %v751 = vpop.f32.mrf.mxu0
        %752 = vmatprep.mubr.f32.mxu0 0.0
        %753 = vmatmul.mubr.f32.gmra.mxu0 %v644
        %v754 = vpop.f32.mrf.mxu0
        %v755 = vadd.f32 0.0, %v754
        %v756 = vpop.f32.mrf.mxu0
        %757 = vmatprep.mubr.f32.mxu0 0.0
        %758 = vmatmul.mubr.f32.gmra.mxu0 %v645
        %v759 = vpop.f32.mrf.mxu0
        %v760 = vadd.f32 0.0, %v759
        %v761 = vpop.f32.mrf.mxu0
        %762 = vmatprep.mubr.f32.mxu0 0.0
        %763 = vmatmul.mubr.f32.gmra.mxu0 %v646
        %v764 = vpop.f32.mrf.mxu0
        %v765 = vadd.f32 0.0, %v764
        %v766 = vpop.f32.mrf.mxu0
        %767 = vmatprep.mubr.f32.mxu0 0.0
        %768 = vmatmul.mubr.f32.gmra.mxu0 %v647
        %v769 = vpop.f32.mrf.mxu0
        %v770 = vadd.f32 0.0, %v769
        %v771 = vpop.f32.mrf.mxu0
        %772 = vmatprep.mubr.f32.mxu0 0.0
        %773 = vmatmul.mubr.f32.gmra.mxu0 %v648
        %v774 = vpop.f32.mrf.mxu0
        %v775 = vadd.f32 0.0, %v774
        %v776 = vpop.f32.mrf.mxu0
        %777 = vmatprep.mubr.f32.mxu0 0.0
        %778 = vmatmul.mubr.f32.gmra.mxu0 %v649
        %v779 = vpop.f32.mrf.mxu0
        %v780 = vadd.f32 0.0, %v779
        %v781 = vpop.f32.mrf.mxu0
        %782 = vmatprep.mubr.f32.mxu0 0.0
        %783 = vmatmul.mubr.f32.gmra.mxu0 %v650
        %v784 = vpop.f32.mrf.mxu0
        %v785 = vadd.f32 0.0, %v784
        %v786 = vpop.f32.mrf.mxu0
        %787 = vmatprep.mubr.f32.mxu0 0.0
        %788 = vmatmul.mubr.f32.gmra.mxu0 %v651
        %v789 = vpop.f32.mrf.mxu0
        %v790 = vadd.f32 0.0, %v789
        %v791 = vpop.f32.mrf.mxu0
        %792 = vmatprep.mubr.f32.mxu0 0.0
        %793 = vmatmul.mubr.f32.gmra.mxu0 %v652
        %v794 = vpop.f32.mrf.mxu0
        %v795 = vadd.f32 0.0, %v794
        %v796 = vpop.f32.mrf.mxu0
        %797 = vmatprep.mubr.f32.mxu0 0.0
        %798 = vmatmul.mubr.f32.gmra.mxu0 %v653
        %v799 = vpop.f32.mrf.mxu0
        %v800 = vadd.f32 0.0, %v799
        %v801 = vpop.f32.mrf.mxu0
        %802 = vmatprep.mubr.f32.mxu0 0.0
        %803 = vmatmul.mubr.f32.gmra.mxu0 %v654
        %v804 = vpop.f32.mrf.mxu0
        %v805 = vadd.f32 0.0, %v804
        %v806 = vpop.f32.mrf.mxu0
        %807 = vmatprep.mubr.f32.mxu0 0.0
        %808 = vmatmul.mubr.f32.gmra.mxu0 %v655
        %v809 = vpop.f32.mrf.mxu0
        %v810 = vadd.f32 0.0, %v809
        %v811 = vpop.f32.mrf.mxu0
        %812 = vmatprep.mubr.f32.mxu0 0.0
        %813 = vmatmul.mubr.f32.gmra.mxu0 %v656
        %v814 = vpop.f32.mrf.mxu0
        %v815 = vadd.f32 0.0, %v814
        %v816 = vpop.f32.mrf.mxu0
        %817 = vdwg.mxu0
        %s818 = sld [smem:[#allocation3]]
        %v819 = vstv %s818
        %v820 = vmul.f32 %v819, %v740
        %v821 = vmul.f32 %v819, %v745
        %v822 = vmul.f32 %v819, %v750
        %v823 = vmul.f32 %v819, %v755
        %v824 = vmul.f32 %v819, %v760
        %v825 = vmul.f32 %v819, %v765
        %v826 = vmul.f32 %v819, %v770
        %v827 = vmul.f32 %v819, %v775
        %v828 = vmul.f32 %v819, %v780
        %v829 = vmul.f32 %v819, %v785
        %v830 = vmul.f32 %v819, %v790
        %v831 = vmul.f32 %v819, %v795
        %v832 = vmul.f32 %v819, %v800
        %v833 = vmul.f32 %v819, %v805
        %v834 = vmul.f32 %v819, %v810
        %v835 = vmul.f32 %v819, %v815
        %v836 = vtanh.pop %v820
        %v837 = vtanh.pop %v821
        %v838 = vtanh.pop %v822
        %v839 = vtanh.pop %v823
        %v840 = vtanh.pop %v824
        %v841 = vtanh.pop %v825
        %v842 = vtanh.pop %v826
        %v843 = vtanh.pop %v827
        %v844 = vtanh.pop %v828
        %v845 = vtanh.pop %v829
        %v846 = vtanh.pop %v830
        %v847 = vtanh.pop %v831
        %v848 = vtanh.pop %v832
        %v849 = vtanh.pop %v833
        %v850 = vtanh.pop %v834
        %v851 = vtanh.pop %v835
        %v852 = vld [vmem:[%s7] sm:$0x1]
        %v854 = vlaneseq
        %v855 = vshrl.u32 %v854, 7
        %v856 = vsub.s32 0, %v855
        %v857 = vrot.slane %v852, %v856
        %v859 = vmul.f32 %v836, %v857
        %v860 = vmul.f32 %v837, %v857
        %v861 = vmul.f32 %v838, %v857
        %v862 = vmul.f32 %v839, %v857
        %v863 = vmul.f32 %v840, %v857
        %v864 = vmul.f32 %v841, %v857
        %v865 = vmul.f32 %v842, %v857
        %v866 = vmul.f32 %v843, %v857
        %v867 = vmul.f32 %v844, %v857
        %v868 = vmul.f32 %v845, %v857
        %v869 = vmul.f32 %v846, %v857
        %v870 = vmul.f32 %v847, %v857
        %v871 = vmul.f32 %v848, %v857
        %v872 = vmul.f32 %v849, %v857
        %v873 = vmul.f32 %v850, %v857
        %v874 = vmul.f32 %v851, %v857
        %v875 = vld [vmem:[%s8] sm:$0x1]
        %v877 = vlaneseq
        %v878 = vshrl.u32 %v877, 7
        %v879 = vsub.s32 0, %v878
        %v880 = vrot.slane %v875, %v879
        %v882 = vadd.f32 %v859, %v880
        %v883 = vadd.f32 %v860, %v880
        %v884 = vadd.f32 %v861, %v880
        %v885 = vadd.f32 %v862, %v880
        %v886 = vadd.f32 %v863, %v880
        %v887 = vadd.f32 %v864, %v880
        %v888 = vadd.f32 %v865, %v880
        %v889 = vadd.f32 %v866, %v880
        %v890 = vadd.f32 %v867, %v880
        %v891 = vadd.f32 %v868, %v880
        %v892 = vadd.f32 %v869, %v880
        %v893 = vadd.f32 %v870, %v880
        %v894 = vadd.f32 %v871, %v880
        %v895 = vadd.f32 %v872, %v880
        %v896 = vadd.f32 %v873, %v880
        %v897 = vadd.f32 %v874, %v880
        %v898 = vadd.f32 %v882, %v384
        %v899 = vadd.f32 %v883, %v385
        %v900 = vadd.f32 %v884, %v386
        %v901 = vadd.f32 %v885, %v387
        %v902 = vadd.f32 %v886, %v388
        %v903 = vadd.f32 %v887, %v389
        %v904 = vadd.f32 %v888, %v390
        %v905 = vadd.f32 %v889, %v391
        %v906 = vadd.f32 %v890, %v392
        %v907 = vadd.f32 %v891, %v393
        %v908 = vadd.f32 %v892, %v394
        %v909 = vadd.f32 %v893, %v395
        %v910 = vadd.f32 %v894, %v396
        %v911 = vadd.f32 %v895, %v397
        %v912 = vadd.f32 %v896, %v398
        %v913 = vadd.f32 %v897, %v399
        %v914 = vmax.f32 %v898, 0.0
        %v915 = vmax.f32 %v899, 0.0
        %v916 = vmax.f32 %v900, 0.0
        %v917 = vmax.f32 %v901, 0.0
        %v918 = vmax.f32 %v902, 0.0
        %v919 = vmax.f32 %v903, 0.0
        %v920 = vmax.f32 %v904, 0.0
        %v921 = vmax.f32 %v905, 0.0
        %v922 = vmax.f32 %v906, 0.0
        %v923 = vmax.f32 %v907, 0.0
        %v924 = vmax.f32 %v908, 0.0
        %v925 = vmax.f32 %v909, 0.0
        %v926 = vmax.f32 %v910, 0.0
        %v927 = vmax.f32 %v911, 0.0
        %v928 = vmax.f32 %v912, 0.0
        %v929 = vmax.f32 %v913, 0.0
        %930 = vst [vmem:[%s381] sm:$0xff] %v914
        %931 = vst [vmem:[%s381 + $0x8] sm:$0xff] %v915
        %932 = vst [vmem:[%s381 + $0x10] sm:$0xff] %v916
        %933 = vst [vmem:[%s381 + $0x18] sm:$0xff] %v917
        %934 = vst [vmem:[%s381 + $0x20] sm:$0xff] %v918
        %935 = vst [vmem:[%s381 + $0x28] sm:$0xff] %v919
        %936 = vst [vmem:[%s381 + $0x30] sm:$0xff] %v920
        %937 = vst [vmem:[%s381 + $0x38] sm:$0xff] %v921
        %938 = vst [vmem:[%s381 + $0x40] sm:$0xff] %v922
        %939 = vst [vmem:[%s381 + $0x48] sm:$0xff] %v923
        %940 = vst [vmem:[%s381 + $0x50] sm:$0xff] %v924
        %941 = vst [vmem:[%s381 + $0x58] sm:$0xff] %v925
        %942 = vst [vmem:[%s381 + $0x60] sm:$0xff] %v926
        %943 = vst [vmem:[%s381 + $0x68] sm:$0xff] %v927
        %944 = vst [vmem:[%s381 + $0x70] sm:$0xff] %v928
        %945 = vst [vmem:[%s381 + $0x78] sm:$0xff] %v929
        %s946 = sand.u32 %s231, 1
        %s947 = scalar_lea.sflag [#allocation6], %s946
        %s948 = sand.u32 %s231, 1
        %s949 = smul.addr %s948, 128
        %s950 = scalar_lea.vmem [#allocation10], %s949
        // Predicated region
        $region69: #{tpu_custom_call.1} parent=55 // pred_check
          %p951 = pneg %p241
        $region70: #{tpu_custom_call.1} parent=55 // pred_check_branch
          %953 = sbr.rel (%p951) target = $region72
        $region71: #{tpu_custom_call.1} parent=55 // pred_region
          %s954 = smul.u32 16, %s29
          %s956 = ssub.s32 2048, 2048
          %957 = vsyncadd %s947, %s956
          %s958 = smul.addr %s954, 128
          %s959 = scalar_lea.hbm %s9, %s958
          %s960 = sshll.u32 %s950, 4
          %s961 = int_to_ptr.vmem [resolvable:$true] %s960
          %966 = dma.vmem_to_hbm [thread:$0]  %s961, 2048, %s959, %s947, 128, 128, 8
        $region72: #{tpu_custom_call.1} parent=55 // pred_fallthru
          _
      $region56: #{tpu_custom_call.1} parent=5 // pred_fallthru
        _
      %p967 = scmp.le.s32.totalorder 2, %s24
      // Predicated region
      $region73: #{tpu_custom_call.1} parent=5 // pred_check
        %p968 = pneg %p967
      $region74: #{tpu_custom_call.1} parent=5 // pred_check_branch
        %970 = sbr.rel (%p968) target = $region76
      $region75: #{tpu_custom_call.1} parent=5 // pred_region
        %s971 = ssub.s32 %s24, 2
        // Predicated region
        $region77: #{tpu_custom_call.1} parent=75 // pred_check
          %p972 = pneg %p247
        $region78: #{tpu_custom_call.1} parent=75 // pred_check_branch
          %974 = sbr.rel (%p972) target = $region80
        $region79: #{tpu_custom_call.1} parent=75 // pred_region
          %s975 = sand.u32 %s232, 1
          %s976 = scalar_lea.sflag [#allocation6], %s975
          %s977 = sand.u32 %s232, 1
          %s978 = smul.addr %s977, 128
          %s979 = scalar_lea.vmem [#allocation10], %s978
          %980 = dma.done %s976, 2048
        $region80: #{tpu_custom_call.1} parent=75 // pred_fallthru
          _
      $region76: #{tpu_custom_call.1} parent=5 // pred_fallthru
        _
    $region6: #{tpu_custom_call.1} parent=1 // loop_footer
      %s28 = sadd.s32 1, %s24
    $region7: #{tpu_custom_call.1} parent=1 // loop_footer_branch
      %23 = sbr.rel target = $region3
    $region8: #{tpu_custom_call.1} parent=1 // loop_exit
      _
    %981 = vsyncpa [#allocation5], 1
    %s982 = scalar_lea.sflag [#allocation5], 1
    %983 = vsyncpa %s982, 1
    %984 = vsyncpa [#allocation8], 1
    %985 = vsyncpa [#allocation6], 1
    %s986 = scalar_lea.sflag [#allocation6], 1
    %987 = vsyncpa %s986, 1

</llo_original>
